<compile_context>
chip_gen: v5e
topology: v5e:2x2
jax: 0.10.0
libtpu: 0.0.40
codegen_flags: <defaults>
</compile_context>

<pallas_src>
import jax
import jax.numpy as jnp
from jax.experimental import pallas as pl
from jax.experimental.pallas import tpu as pltpu


def _round_up(n, m):
    return ((n + m - 1) // m) * m


def _vmem_capacity_bytes():
    try:
        return int(pltpu.get_tpu_info().vmem_capacity_bytes)
    except Exception:
        return 64 << 20  # conservative: v7x per-TC VMEM


def prepare_highway_params(w_proj, b_proj, w_gate, b_gate, *,
                           weight_block_bytes=8 << 20):
    """One-time weight prep (hoisted out of the per-forward path).

    Builds a fused, zero-padded, bf16, column-block-interleaved weight
    [Wp_blk0 | Wg_blk0 | Wp_blk1 | Wg_blk1 | ...]  of shape (E_pad, 2*E_pad)
    and the matching fused f32 bias (1, 2*E_pad), plus the tiling geometry.
    """
    E = int(w_proj.shape[0])
    E_pad = _round_up(E, 128)
    # One bf16 weight block (E_pad, 2*tn) must stay within weight_block_bytes.
    if 2 * E_pad * E_pad * 2 <= weight_block_bytes:
        tn = E_pad                                       # single resident block
    else:
        tn = max(256, (weight_block_bytes // (4 * E_pad)) // 256 * 256)
        E_pad = _round_up(E_pad, tn)                     # tn | E_pad
    nn = E_pad // tn

    f32 = jnp.float32
    pad2 = ((0, E_pad - E), (0, E_pad - E))
    wp = jnp.pad(w_proj.T.astype(f32), pad2).reshape(E_pad, nn, tn)
    wg = jnp.pad(w_gate.T.astype(f32), pad2).reshape(E_pad, nn, tn)
    w_fused = jnp.stack([wp, wg], axis=2).reshape(E_pad, 2 * E_pad)
    w_fused = w_fused.astype(jnp.bfloat16)

    bp = jnp.pad(b_proj.astype(f32), (0, E_pad - E)).reshape(nn, tn)
    bg = jnp.pad(b_gate.astype(f32), (0, E_pad - E)).reshape(nn, tn)
    b_fused = jnp.stack([bp, bg], axis=1).reshape(1, 2 * E_pad)

    return dict(w=w_fused, b=b_fused, E=E, E_pad=E_pad, tn=tn, nn=nn)


def _make_kernel(tn, split_residual):
    """Kernel factory.  `split_residual` is True when the fused-N dimension is
    tiled (nn > 1): the residual x columns for this block then arrive as a
    separate (tb, tn) input block instead of a dynamic lane slice."""
    if split_residual:
        def kernel(x_ref, xr_ref, w_ref, b_ref, o_ref):
            xm = x_ref[...]                              # (tb, E_pad), io dtype
            if xm.dtype != jnp.bfloat16:
                xm = xm.astype(jnp.bfloat16)
            # One fused GEMM per column block: (tb, E_pad) @ (E_pad, 2*tn).
            y = jnp.dot(xm, w_ref[...], preferred_element_type=jnp.float32)
            y = y + b_ref[...]                           # f32 bias broadcast
            proj = jnp.maximum(y[:, :tn], 0.0)           # ReLU    (VPU, f32)
            gate = jax.nn.sigmoid(y[:, tn:])             # sigmoid (EUP, f32)
            xr = xr_ref[...].astype(jnp.float32)         # residual columns
            # x + g*(p - x) == g*p + (1-g)*x
            o_ref[...] = (xr + gate * (proj - xr)).astype(o_ref.dtype)
    else:
        def kernel(x_ref, w_ref, b_ref, o_ref):
            x = x_ref[...]                               # (tb, E_pad), io dtype
            xm = x if x.dtype == jnp.bfloat16 else x.astype(jnp.bfloat16)
            y = jnp.dot(xm, w_ref[...], preferred_element_type=jnp.float32)
            y = y + b_ref[...]
            proj = jnp.maximum(y[:, :tn], 0.0)
            gate = jax.nn.sigmoid(y[:, tn:])
            xr = x.astype(jnp.float32)
            o_ref[...] = (xr + gate * (proj - xr)).astype(o_ref.dtype)
    return kernel


def highway_forward(x, params, *, tb=None):
    """x: (B, E) f32 or bf16.  params: output of prepare_highway_params."""
    w_fused, b_fused = params["w"], params["b"]
    E, E_pad, tn, nn = params["E"], params["E_pad"], params["tn"], params["nn"]
    B, Ex = x.shape
    assert Ex == E, f"expected last dim {E}, got {Ex}"

    out_dtype = x.dtype
    x_bytes = jnp.dtype(x.dtype).itemsize
    o_bytes = jnp.dtype(out_dtype).itemsize

    vmem_cap = _vmem_capacity_bytes()
    vmem_budget = vmem_cap - (8 << 20)

    w_blk = E_pad * (2 * tn) * 2            # bf16 fused weight block
    b_blk = (2 * tn) * 4                    # f32 fused bias block
    xr_extra = (2 * tn * x_bytes) if nn > 1 else 0   # per-row residual stream

    # Batch-tile size: large tiles for big B (amortize ~0.35us/step), but keep
    # >= 2 batch tiles when B >= 16 so v7x's 2 TensorCores both get work.
    if tb is None:
        if B >= 2048:
            tb = 1024
        elif B >= 1024:
            tb = 512
        elif B >= 512:
            tb = 256
        elif B >= 16:
            tb = _round_up(-(-B // 2), 8)
        else:
            tb = _round_up(max(B, 8), 8)
    # Shrink tb until the double-buffered footprint fits the VMEM budget.
    while tb > 8:
        foot = 2 * (w_blk + b_blk) + 2 * tb * (E_pad * x_bytes
                                               + tn * o_bytes + xr_extra)
        if foot <= vmem_budget:
            break
        tb = max(8, _round_up(tb // 2, 8))

    B_pad = _round_up(B, tb)
    footprint = 2 * (w_blk + b_blk) + 2 * tb * (E_pad * x_bytes
                                                + tn * o_bytes + xr_extra)
    vmem_limit = int(min(max(footprint + (4 << 20), 16 << 20),
                         vmem_cap - (4 << 20)))

    # Pad x only when actually needed (skip extra full-array HBM passes).
    padded = (B_pad != B) or (E_pad != E)
    x_in = jnp.pad(x, ((0, B_pad - B), (0, E_pad - E))) if padded else x

    split_residual = nn > 1
    kernel = _make_kernel(tn, split_residual)
    grid = (nn, B_pad // tb)                # j (cols) slow, i (batch) fast

    def build(single_buffer_weights):
        # Grid-invariant weight/bias (nn == 1): single-buffer to save VMEM.
        use_buf1 = single_buffer_weights and nn == 1
        if use_buf1:
            w_spec = pl.BlockSpec((E_pad, 2 * tn), lambda j, i: (0, j),
                                  pipeline_mode=pl.Buffered(1))
            b_spec = pl.BlockSpec((1, 2 * tn), lambda j, i: (0, j),
                                  pipeline_mode=pl.Buffered(1))
        else:
            w_spec = pl.BlockSpec((E_pad, 2 * tn), lambda j, i: (0, j))
            b_spec = pl.BlockSpec((1, 2 * tn), lambda j, i: (0, j))

        in_specs = [pl.BlockSpec((tb, E_pad), lambda j, i: (i, 0))]   # x (K dim)
        if split_residual:
            in_specs.append(pl.BlockSpec((tb, tn), lambda j, i: (i, j)))  # x residual cols
        in_specs += [w_spec, b_spec]

        return pl.pallas_call(
            kernel,
            out_shape=jax.ShapeDtypeStruct((B_pad, E_pad), out_dtype),
            grid_spec=pltpu.PrefetchScalarGridSpec(
                num_scalar_prefetch=0,
                grid=grid,
                in_specs=in_specs,
                out_specs=pl.BlockSpec((tb, tn), lambda j, i: (i, j)),
            ),
            compiler_params=pltpu.CompilerParams(
                dimension_semantics=("parallel", "parallel"),
                vmem_limit_bytes=vmem_limit),
        )

    args = (x_in, x_in, w_fused, b_fused) if split_residual \
        else (x_in, w_fused, b_fused)

    try:
        out_pad = build(True)(*args)
    except Exception:
        # Fallback if pipeline_mode=pl.Buffered(1) is unsupported here.
        out_pad = build(False)(*args)

    if padded:
        out_pad = out_pad[:B, :E]
    return out_pad


if __name__ == "__main__":
    key = jax.random.PRNGKey(0)
    B, E = 8, 32                         # batch, word_embed_size
    kx, kwp, kbp, kwg, kbg = jax.random.split(key, 5)

    # Deterministic init mimicking nn.Linear's U(-1/sqrt(in), 1/sqrt(in)).
    bound = 1.0 / (E ** 0.5)
    x = jax.random.normal(kx, (B, E), dtype=jnp.float32)
    w_proj = jax.random.uniform(kwp, (E, E), jnp.float32, -bound, bound)
    b_proj = jax.random.uniform(kbp, (E,), jnp.float32, -bound, bound)
    w_gate = jax.random.uniform(kwg, (E, E), jnp.float32, -bound, bound)
    b_gate = jax.random.uniform(kbg, (E,), jnp.float32, -bound, bound)

    def ref_fn(xi, wp, bp, wg, bg):
        p = jnp.maximum(xi @ wp.T + bp, 0.0)
        g = jax.nn.sigmoid(xi @ wg.T + bg)
        return g * p + (1.0 - g) * xi

    # --- f32 input path (weights prepared once, reused across calls) -------
    params = prepare_highway_params(w_proj, b_proj, w_gate, b_gate)
    out = jax.block_until_ready(highway_forward(x, params))
    ref = ref_fn(x, w_proj, b_proj, w_gate, b_gate)
    assert out.shape == (B, E) and out.dtype == x.dtype
    # bf16 MXU inputs with f32 accumulation -> looser tolerance (documented).
    assert jnp.allclose(out, ref, atol=2e-2, rtol=2e-2), \
        float(jnp.max(jnp.abs(out - ref)))

    # --- bf16 streaming path (same prepared weights) ------------------------
    xb = x.astype(jnp.bfloat16)
    outb = jax.block_until_ready(highway_forward(xb, params))
    assert outb.shape == (B, E) and outb.dtype == jnp.bfloat16
    assert jnp.allclose(outb.astype(jnp.float32), ref, atol=5e-2, rtol=5e-2), \
        float(jnp.max(jnp.abs(outb.astype(jnp.float32) - ref)))

    # --- forced column-tiled (nn > 1) weight path, 2 batch tiles ------------
    B2, E2 = 32, 512
    k2 = jax.random.split(jax.random.PRNGKey(1), 5)
    bound2 = 1.0 / (E2 ** 0.5)
    x2 = jax.random.normal(k2[0], (B2, E2), dtype=jnp.float32)
    w2p = jax.random.uniform(k2[1], (E2, E2), jnp.float32, -bound2, bound2)
    b2p = jax.random.uniform(k2[2], (E2,), jnp.float32, -bound2, bound2)
    w2g = jax.random.uniform(k2[3], (E2, E2), jnp.float32, -bound2, bound2)
    b2g = jax.random.uniform(k2[4], (E2,), jnp.float32, -bound2, bound2)
    params2 = prepare_highway_params(w2p, b2p, w2g, b2g, weight_block_bytes=1)
    assert params2["nn"] > 1
    out2 = jax.block_until_ready(highway_forward(x2, params2))
    ref2 = ref_fn(x2, w2p, b2p, w2g, b2g)
    assert out2.shape == (B2, E2)
    assert jnp.allclose(out2, ref2, atol=2e-2, rtol=2e-2), \
        float(jnp.max(jnp.abs(out2 - ref2)))

    print("KERNEL_OK")
</pallas_src>

<mosaic_0001>
module attributes {stable_mosaic.version = 11 : i64} {
  func.func @kernel(%arg0: i32, %arg1: i32, %arg2: memref<8x128xf32, #tpu.memory_space<vmem>>, %arg3: memref<128x256xbf16, #tpu.memory_space<vmem>>, %arg4: memref<1x256xf32, #tpu.memory_space<vmem>>, %arg5: memref<8x128xf32, #tpu.memory_space<vmem>>) attributes {dimension_semantics = [#tpu.dimension_semantics<parallel>, #tpu.dimension_semantics<parallel>], iteration_bounds = array<i64: 1, 1>, scalar_prefetch = 0 : i64, scratch_operands = 0 : i64, tpu.core_type = #tpu.core_type<tc>, window_params = [{transform_indices = @transform_0, window_bounds = array<i64: 8, 128>}, {pipeline_mode = #tpu.pipeline_mode<synchronous>, transform_indices = @transform_1, window_bounds = array<i64: 128, 256>}, {pipeline_mode = #tpu.pipeline_mode<synchronous>, transform_indices = @transform_2, window_bounds = array<i64: 1, 256>}, {transform_indices = @transform_3, window_bounds = array<i64: 8, 128>}]} {
    %c0 = arith.constant 0 : index
    %c0_0 = arith.constant 0 : index
    %0 = vector.load %arg2[%c0, %c0_0] : memref<8x128xf32, #tpu.memory_space<vmem>>, vector<8x128xf32>
    %1 = arith.truncf %0 : vector<8x128xf32> to vector<8x128xbf16>
    %c0_1 = arith.constant 0 : index
    %c0_2 = arith.constant 0 : index
    %2 = vector.load %arg3[%c0_1, %c0_2] : memref<128x256xbf16, #tpu.memory_space<vmem>>, vector<128x256xbf16>
    %cst = arith.constant dense<0.000000e+00> : vector<8x256xf32>
    %3 = tpu.matmul %1, %2, %cst {dimension_numbers = #tpu.dot_dimension_numbers<[1], [0], [0], [1], [0, 0, 1, 1], [], []>} : vector<8x128xbf16>, vector<128x256xbf16>, vector<8x256xf32> -> vector<8x256xf32>
    %c0_3 = arith.constant 0 : index
    %c0_4 = arith.constant 0 : index
    %4 = vector.load %arg4[%c0_3, %c0_4] : memref<1x256xf32, #tpu.memory_space<vmem>>, vector<1x256xf32>
    %5 = vector.broadcast %4 : vector<1x256xf32> to vector<8x256xf32>
    %6 = arith.addf %3, %5 : vector<8x256xf32>
    %7 = vector.extract_strided_slice %6 {offsets = [0, 0], sizes = [8, 128], strides = [1, 1]} : vector<8x256xf32> to vector<8x128xf32>
    %cst_5 = arith.constant 0.000000e+00 : f32
    %8 = vector.broadcast %cst_5 : f32 to vector<8x128xf32>
    %9 = arith.maximumf %7, %8 : vector<8x128xf32>
    %10 = vector.extract_strided_slice %6 {offsets = [0, 128], sizes = [8, 128], strides = [1, 1]} : vector<8x256xf32> to vector<8x128xf32>
    %11 = arith.negf %10 : vector<8x128xf32>
    %12 = math.exp %11 : vector<8x128xf32>
    %cst_6 = arith.constant 1.000000e+00 : f32
    %13 = vector.broadcast %cst_6 : f32 to vector<8x128xf32>
    %14 = arith.addf %13, %12 : vector<8x128xf32>
    %15 = arith.divf %13, %14 : vector<8x128xf32>
    %16 = arith.subf %9, %0 : vector<8x128xf32>
    %17 = arith.mulf %15, %16 : vector<8x128xf32>
    %18 = arith.addf %0, %17 : vector<8x128xf32>
    %c0_7 = arith.constant 0 : index
    %c0_8 = arith.constant 0 : index
    %19 = vector.load %arg5[%c0_7, %c0_8] : memref<8x128xf32, #tpu.memory_space<vmem>>, vector<8x128xf32>
    tpu.vector_store %arg5[%c0_7, %c0_8], %18 {strides = array<i32>} : memref<8x128xf32, #tpu.memory_space<vmem>>, vector<8x128xf32>,
    return
  }
  func.func @transform_0(%arg0: i32, %arg1: i32) -> (i32, i32) {
    %c0_i32 = arith.constant 0 : i32
    %c0_i32_0 = arith.constant 0 : i32
    return %arg1, %c0_i32 : i32, i32
  }
  func.func @transform_1(%arg0: i32, %arg1: i32) -> (i32, i32) {
    %c0_i32 = arith.constant 0 : i32
    %c0_i32_0 = arith.constant 0 : i32
    return %c0_i32, %arg0 : i32, i32
  }
  func.func @transform_2(%arg0: i32, %arg1: i32) -> (i32, i32) {
    %c0_i32 = arith.constant 0 : i32
    %c0_i32_0 = arith.constant 0 : i32
    return %c0_i32, %arg0 : i32, i32
  }
  func.func @transform_3(%arg0: i32, %arg1: i32) -> (i32, i32) {
    %c0_i32 = arith.constant 0 : i32
    return %arg1, %arg0 : i32, i32
  }
}

module attributes {stable_mosaic.version = 11 : i64} {
  func.func @kernel(%arg0: i32, %arg1: i32, %arg2: memref<8x128xf32, #tpu.memory_space<vmem>>, %arg3: memref<128x256xbf16, #tpu.memory_space<vmem>>, %arg4: memref<1x256xf32, #tpu.memory_space<vmem>>, %arg5: memref<8x128xf32, #tpu.memory_space<vmem>>) attributes {dimension_semantics = [#tpu.dimension_semantics<parallel>, #tpu.dimension_semantics<parallel>], iteration_bounds = array<i64: 1, 1>, scalar_prefetch = 0 : i64, scratch_operands = 0 : i64, tpu.core_type = #tpu.core_type<tc>, window_params = [{transform_indices = @transform_0, window_bounds = array<i64: 8, 128>}, {transform_indices = @transform_1, window_bounds = array<i64: 128, 256>}, {transform_indices = @transform_2, window_bounds = array<i64: 1, 256>}, {transform_indices = @transform_3, window_bounds = array<i64: 8, 128>}]} {
    %c0 = arith.constant 0 : index
    %c0_0 = arith.constant 0 : index
    %0 = vector.load %arg2[%c0, %c0_0] : memref<8x128xf32, #tpu.memory_space<vmem>>, vector<8x128xf32>
    %1 = arith.truncf %0 : vector<8x128xf32> to vector<8x128xbf16>
    %c0_1 = arith.constant 0 : index
    %c0_2 = arith.constant 0 : index
    %2 = vector.load %arg3[%c0_1, %c0_2] : memref<128x256xbf16, #tpu.memory_space<vmem>>, vector<128x256xbf16>
    %cst = arith.constant dense<0.000000e+00> : vector<8x256xf32>
    %3 = tpu.matmul %1, %2, %cst {dimension_numbers = #tpu.dot_dimension_numbers<[1], [0], [0], [1], [0, 0, 1, 1], [], []>} : vector<8x128xbf16>, vector<128x256xbf16>, vector<8x256xf32> -> vector<8x256xf32>
    %c0_3 = arith.constant 0 : index
    %c0_4 = arith.constant 0 : index
    %4 = vector.load %arg4[%c0_3, %c0_4] : memref<1x256xf32, #tpu.memory_space<vmem>>, vector<1x256xf32>
    %5 = vector.broadcast %4 : vector<1x256xf32> to vector<8x256xf32>
    %6 = arith.addf %3, %5 : vector<8x256xf32>
    %7 = vector.extract_strided_slice %6 {offsets = [0, 0], sizes = [8, 128], strides = [1, 1]} : vector<8x256xf32> to vector<8x128xf32>
    %cst_5 = arith.constant 0.000000e+00 : f32
    %8 = vector.broadcast %cst_5 : f32 to vector<8x128xf32>
    %9 = arith.maximumf %7, %8 : vector<8x128xf32>
    %10 = vector.extract_strided_slice %6 {offsets = [0, 128], sizes = [8, 128], strides = [1, 1]} : vector<8x256xf32> to vector<8x128xf32>
    %11 = arith.negf %10 : vector<8x128xf32>
    %12 = math.exp %11 : vector<8x128xf32>
    %cst_6 = arith.constant 1.000000e+00 : f32
    %13 = vector.broadcast %cst_6 : f32 to vector<8x128xf32>
    %14 = arith.addf %13, %12 : vector<8x128xf32>
    %15 = arith.divf %13, %14 : vector<8x128xf32>
    %16 = arith.subf %9, %0 : vector<8x128xf32>
    %17 = arith.mulf %15, %16 : vector<8x128xf32>
    %18 = arith.addf %0, %17 : vector<8x128xf32>
    %c0_7 = arith.constant 0 : index
    %c0_8 = arith.constant 0 : index
    %19 = vector.load %arg5[%c0_7, %c0_8] : memref<8x128xf32, #tpu.memory_space<vmem>>, vector<8x128xf32>
    tpu.vector_store %arg5[%c0_7, %c0_8], %18 {strides = array<i32>} : memref<8x128xf32, #tpu.memory_space<vmem>>, vector<8x128xf32>,
    return
  }
  func.func @transform_0(%arg0: i32, %arg1: i32) -> (i32, i32) {
    %c0_i32 = arith.constant 0 : i32
    %c0_i32_0 = arith.constant 0 : i32
    return %arg1, %c0_i32 : i32, i32
  }
  func.func @transform_1(%arg0: i32, %arg1: i32) -> (i32, i32) {
    %c0_i32 = arith.constant 0 : i32
    %c0_i32_0 = arith.constant 0 : i32
    return %c0_i32, %arg0 : i32, i32
  }
  func.func @transform_2(%arg0: i32, %arg1: i32) -> (i32, i32) {
    %c0_i32 = arith.constant 0 : i32
    %c0_i32_0 = arith.constant 0 : i32
    return %c0_i32, %arg0 : i32, i32
  }
  func.func @transform_3(%arg0: i32, %arg1: i32) -> (i32, i32) {
    %c0_i32 = arith.constant 0 : i32
    return %arg1, %arg0 : i32, i32
  }
}

</mosaic_0001>

<llo_original>
// kernel: tpu_custom_call.1
$region0: #{tpu_custom_call.1}
  #allocation0 [shape = 'u32[]', space=smem, size = 0x4, offset = 0x4, fixed_abs, tag = 'smem constant byte address 0x4 - core index']
  #allocation1 [shape = 'u32[72,128]{1,0:T(1,128)}', space=vmem, size = 0x9000, scoped, tag = 'internal scratch']
  %s0 = inlined_call_operand.hbm [shape: f32[8,128], index: 0, kind: input, shape index: {}]
  %s1 = inlined_call_operand.hbm [shape: bf16[128,256], index: 1, kind: input, shape index: {}]
  %s2 = inlined_call_operand.hbm [shape: f32[1,256], index: 2, kind: input, shape index: {}]
  %s3 = inlined_call_operand.hbm [shape: f32[8,128], index: 3, kind: output, shape index: {}]
  %s4 = sld [smem:[#allocation0]]
  $region34: #{tpu_custom_call.1} parent=0
    _
  %s6 = ssub.s32 1, %s4
  %s7 = scalar_select 0, %s6, %s4
  $region1: #{tpu_custom_call.1} parent=0
    #allocation2 [shape = 'u8[4096]{0}', space=vmem, size = 0x1000, scoped, tag = 'input window, operand 0, single buffered']
    #allocation3 [shape = 's32[1]{0}', space=sflag, size = 0x4, scoped, tag = 'scoped memory for tpu_custom_call.1']
    #allocation4 [shape = 's32[1]{0}', space=sflag, size = 0x4, scoped, tag = 'scoped memory for tpu_custom_call.1']
    #allocation5 [shape = 'u8[65536]{0}', space=vmem, size = 0x10000, scoped, tag = 'input window, operand 1, single buffered']
    #allocation6 [shape = 's32[1]{0}', space=sflag, size = 0x4, scoped, tag = 'scoped memory for tpu_custom_call.1']
    #allocation7 [shape = 'u8[1024]{0}', space=vmem, size = 0x400, scoped, tag = 'input window, operand 2, single buffered']
    #allocation8 [shape = 'u8[4096]{0}', space=vmem, size = 0x1000, scoped, tag = 'output window, operand 0, single buffered']
    %8 = vsyncpa [#allocation3], 0
    %9 = vsyncpa [#allocation6], 0
    %10 = vsyncpa [#allocation4], 0
    // Predicated region
    $region2: #{tpu_custom_call.1} parent=1 // pred_check
      _
    $region3: #{tpu_custom_call.1} parent=1 // pred_check_branch
      %12 = sbr.rel (0) target = $region5
    $region4: #{tpu_custom_call.1} parent=1 // pred_region
      %14 = vsyncadd [#allocation3], 0
      %s16 = sshll.u32 %s0, 4
      %s17 = int_to_ptr.hbm [resolvable:$true] %s16
      %s18 = sshll.u32 [#allocation2], 4
      %s19 = int_to_ptr.vmem [resolvable:$true] %s18
      %21 = dma.hbm_to_vmem [thread:$0]  %s17, 128, %s19, [#allocation3]
    $region5: #{tpu_custom_call.1} parent=1 // pred_fallthru
      _
    // Predicated region
    $region6: #{tpu_custom_call.1} parent=1 // pred_check
      _
    $region7: #{tpu_custom_call.1} parent=1 // pred_check_branch
      %23 = sbr.rel (0) target = $region9
    $region8: #{tpu_custom_call.1} parent=1 // pred_region
      %25 = vsyncadd [#allocation6], 0
      %s26 = sshll.u32 %s1, 4
      %s27 = int_to_ptr.hbm [resolvable:$true] %s26
      %s28 = sshll.u32 [#allocation5], 4
      %s29 = int_to_ptr.vmem [resolvable:$true] %s28
      %34 = dma.hbm_to_vmem [thread:$0]  %s27, 2048, %s29, [#allocation6], 128, 128, 8
    $region9: #{tpu_custom_call.1} parent=1 // pred_fallthru
      _
    // Predicated region
    $region10: #{tpu_custom_call.1} parent=1 // pred_check
      _
    $region11: #{tpu_custom_call.1} parent=1 // pred_check_branch
      %36 = sbr.rel (0) target = $region13
    $region12: #{tpu_custom_call.1} parent=1 // pred_region
      %38 = vsyncadd [#allocation6], 0
      %s40 = sshll.u32 %s2, 4
      %s41 = int_to_ptr.hbm [resolvable:$true] %s40
      %s42 = sshll.u32 [#allocation7], 4
      %s43 = int_to_ptr.vmem [resolvable:$true] %s42
      %45 = dma.hbm_to_vmem [thread:$0]  %s41, 32, %s43, [#allocation6]
    $region13: #{tpu_custom_call.1} parent=1 // pred_fallthru
      _
    // Predicated region
    $region14: #{tpu_custom_call.1} parent=1 // pred_check
      _
    $region15: #{tpu_custom_call.1} parent=1 // pred_check_branch
      %47 = sbr.rel (0) target = $region17
    $region16: #{tpu_custom_call.1} parent=1 // pred_region
      %49 = dma.done [#allocation3], 128
    $region17: #{tpu_custom_call.1} parent=1 // pred_fallthru
      _
    // Predicated region
    $region18: #{tpu_custom_call.1} parent=1 // pred_check
      _
    $region19: #{tpu_custom_call.1} parent=1 // pred_check_branch
      %51 = sbr.rel (0) target = $region21
    $region20: #{tpu_custom_call.1} parent=1 // pred_region
      %53 = dma.done [#allocation6], 2048
    $region21: #{tpu_custom_call.1} parent=1 // pred_fallthru
      _
    // Predicated region
    $region22: #{tpu_custom_call.1} parent=1 // pred_check
      _
    $region23: #{tpu_custom_call.1} parent=1 // pred_check_branch
      %55 = sbr.rel (0) target = $region25
    $region24: #{tpu_custom_call.1} parent=1 // pred_region
      %57 = dma.done [#allocation6], 32
    $region25: #{tpu_custom_call.1} parent=1 // pred_fallthru
      _
    %v58 = vld [vmem:[#allocation2] sm:$0xff]
    %v59 = vpack.c.bf16 %v58, %v58
    %v60 = vld [vmem:[#allocation5] sm:$0xff]
    %v61 = vld [vmem:[#allocation5 + $0x8] sm:$0xff]
    %v62 = vld [vmem:[#allocation5 + $0x10] sm:$0xff]
    %v63 = vld [vmem:[#allocation5 + $0x18] sm:$0xff]
    %v64 = vld [vmem:[#allocation5 + $0x20] sm:$0xff]
    %v65 = vld [vmem:[#allocation5 + $0x28] sm:$0xff]
    %v66 = vld [vmem:[#allocation5 + $0x30] sm:$0xff]
    %v67 = vld [vmem:[#allocation5 + $0x38] sm:$0xff]
    %v68 = vld [vmem:[#allocation5 + $0x40] sm:$0xff]
    %v69 = vld [vmem:[#allocation5 + $0x48] sm:$0xff]
    %v70 = vld [vmem:[#allocation5 + $0x50] sm:$0xff]
    %v71 = vld [vmem:[#allocation5 + $0x58] sm:$0xff]
    %v72 = vld [vmem:[#allocation5 + $0x60] sm:$0xff]
    %v73 = vld [vmem:[#allocation5 + $0x68] sm:$0xff]
    %v74 = vld [vmem:[#allocation5 + $0x70] sm:$0xff]
    %v75 = vld [vmem:[#allocation5 + $0x78] sm:$0xff]
    %v76 = vld [vmem:[#allocation7] sm:$0x3]
    %v78 = vperm.slane %v76, 0
    %v79 = vperm.slane %v76, 1
    %v98 = vunpack.c.l.b16 %v60
    %v99 = vunpack.c.h.b16 %v60
    %v100 = vunpack.c.l.b16 %v61
    %v101 = vunpack.c.h.b16 %v61
    %v102 = vunpack.c.l.b16 %v62
    %v103 = vunpack.c.h.b16 %v62
    %v104 = vunpack.c.l.b16 %v63
    %v105 = vunpack.c.h.b16 %v63
    %v106 = vunpack.c.l.b16 %v64
    %v107 = vunpack.c.h.b16 %v64
    %v108 = vunpack.c.l.b16 %v65
    %v109 = vunpack.c.h.b16 %v65
    %v110 = vunpack.c.l.b16 %v66
    %v111 = vunpack.c.h.b16 %v66
    %v112 = vunpack.c.l.b16 %v67
    %v113 = vunpack.c.h.b16 %v67
    %v114 = vunpack.c.l.b16 %v68
    %v115 = vunpack.c.h.b16 %v68
    %v116 = vunpack.c.l.b16 %v69
    %v117 = vunpack.c.h.b16 %v69
    %v118 = vunpack.c.l.b16 %v70
    %v119 = vunpack.c.h.b16 %v70
    %v120 = vunpack.c.l.b16 %v71
    %v121 = vunpack.c.h.b16 %v71
    %v122 = vunpack.c.l.b16 %v72
    %v123 = vunpack.c.h.b16 %v72
    %v124 = vunpack.c.l.b16 %v73
    %v125 = vunpack.c.h.b16 %v73
    %v126 = vunpack.c.l.b16 %v74
    %v127 = vunpack.c.h.b16 %v74
    %v128 = vunpack.c.l.b16 %v75
    %v129 = vunpack.c.h.b16 %v75
    %v130 = vpack.c.b16 %v100, %v98
    %v131 = vpack.c.b16 %v101, %v99
    %v132 = vpack.c.b16 %v104, %v102
    %v133 = vpack.c.b16 %v105, %v103
    %v134 = vpack.c.b16 %v108, %v106
    %v135 = vpack.c.b16 %v109, %v107
    %v136 = vpack.c.b16 %v112, %v110
    %v137 = vpack.c.b16 %v113, %v111
    %v138 = vpack.c.b16 %v116, %v114
    %v139 = vpack.c.b16 %v117, %v115
    %v140 = vpack.c.b16 %v120, %v118
    %v141 = vpack.c.b16 %v121, %v119
    %v142 = vpack.c.b16 %v124, %v122
    %v143 = vpack.c.b16 %v125, %v123
    %v144 = vpack.c.b16 %v128, %v126
    %v145 = vpack.c.b16 %v129, %v127
    %162 = vmatpush.bf16.msra.mxu0 %v144
    %163 = vmatpush.bf16.msra.mxu0 %v142
    %164 = vmatpush.bf16.msra.mxu0 %v140
    %165 = vmatpush.bf16.msra.mxu0 %v138
    %166 = vmatpush.bf16.msra.mxu0 %v136
    %167 = vmatpush.bf16.msra.mxu0 %v134
    %168 = vmatpush.bf16.msra.mxu0 %v132
    %169 = vmatpush.bf16.msra.mxu0 %v130
    %170 = vmatmul.bf16.gmra.mxu0 %v59
    %v171 = vpop.f32.mrf.mxu0
    %v172 = vadd.f32 %v78, %v171
    %v173 = vpop.f32.mrf.mxu0
    %174 = vdwg.mxu0
    %175 = vmatpush.bf16.msra.mxu0 %v145
    %176 = vmatpush.bf16.msra.mxu0 %v143
    %177 = vmatpush.bf16.msra.mxu0 %v141
    %178 = vmatpush.bf16.msra.mxu0 %v139
    %179 = vmatpush.bf16.msra.mxu0 %v137
    %180 = vmatpush.bf16.msra.mxu0 %v135
    %181 = vmatpush.bf16.msra.mxu0 %v133
    %182 = vmatpush.bf16.msra.mxu0 %v131
    %183 = vmatmul.bf16.gmra.mxu0 %v59
    %v184 = vpop.f32.mrf.mxu0
    %v185 = vadd.f32 %v79, %v184
    %v186 = vpop.f32.mrf.mxu0
    %187 = vdwg.mxu0
    %v188 = vmax.f32 %v172, 0.0
    %v189 = vxor.u32 %v185, 2147483648
    %v190 = vmul.f32 %v189, 1.442695
    %v191 = vpow.pop %v190
    %v192 = vadd.f32 %v191, 1.0
    %v193 = vrcp.pop %v192
    %v194 = vmul.f32 %v192, %v193
    %v195 = vsub.f32 1.0, %v194
    %v196 = vmul.f32 %v193, %v195
    %v197 = vadd.f32 %v193, %v196
    %vm198 = vweird.f32 %v192
    %vm199 = vweird.f32 %v193
    %vm200 = vmor %vm198, %vm199
    %v201 = vsel %vm200, %v193, %v197
    %v202 = vand.u32 2147483647, %v192
    %vm203 = vcmp.eq.f32.partialorder %v202, 8.507059e+37
    %v204 = vand.u32 %v192, 2147483648
    %v205 = vor.u32 1.1754944e-38, %v204
    %v206 = vsel %vm203, %v205, %v201
    %v207 = vmul.f32 1.0, %v206
    %v208 = vsub.f32 %v188, %v58
    %v209 = vmul.f32 %v207, %v208
    %v210 = vadd.f32 %v58, %v209
    %211 = vst [vmem:[#allocation8] sm:$0xff] %v210
    // Predicated region
    $region26: #{tpu_custom_call.1} parent=1 // pred_check
      _
    $region27: #{tpu_custom_call.1} parent=1 // pred_check_branch
      %213 = sbr.rel (0) target = $region29
    $region28: #{tpu_custom_call.1} parent=1 // pred_region
      %215 = vsyncadd [#allocation4], 0
      %s217 = sshll.u32 [#allocation8], 4
      %s218 = int_to_ptr.vmem [resolvable:$true] %s217
      %s219 = sshll.u32 %s3, 4
      %s220 = int_to_ptr.hbm [resolvable:$true] %s219
      %222 = dma.vmem_to_hbm [thread:$0]  %s218, 128, %s220, [#allocation4]
    $region29: #{tpu_custom_call.1} parent=1 // pred_fallthru
      _
    // Predicated region
    $region30: #{tpu_custom_call.1} parent=1 // pred_check
      _
    $region31: #{tpu_custom_call.1} parent=1 // pred_check_branch
      %224 = sbr.rel (0) target = $region33
    $region32: #{tpu_custom_call.1} parent=1 // pred_region
      %226 = dma.done [#allocation4], 128
    $region33: #{tpu_custom_call.1} parent=1 // pred_fallthru
      _
    %227 = vsyncpa [#allocation3], 1
    %228 = vsyncpa [#allocation6], 1
    %229 = vsyncpa [#allocation4], 1

// kernel: tpu_custom_call.1
$region0: #{tpu_custom_call.1}
  #allocation0 [shape = 'u32[]', space=smem, size = 0x4, offset = 0x4, fixed_abs, tag = 'smem constant byte address 0x4 - core index']
  #allocation1 [shape = 'u32[72,128]{1,0:T(1,128)}', space=vmem, size = 0x9000, scoped, tag = 'internal scratch']
  %s0 = inlined_call_operand.hbm [shape: f32[8,128], index: 0, kind: input, shape index: {}]
  %s1 = inlined_call_operand.hbm [shape: bf16[128,256], index: 1, kind: input, shape index: {}]
  %s2 = inlined_call_operand.hbm [shape: f32[1,256], index: 2, kind: input, shape index: {}]
  %s3 = inlined_call_operand.hbm [shape: f32[8,128], index: 3, kind: output, shape index: {}]
  %s4 = sld [smem:[#allocation0]]
  $region34: #{tpu_custom_call.1} parent=0
    _
  %s6 = ssub.s32 1, %s4
  %s7 = scalar_select 0, %s6, %s4
  $region1: #{tpu_custom_call.1} parent=0
    #allocation2 [shape = 'u8[4096]{0}', space=vmem, size = 0x1000, scoped, tag = 'input window, operand 0, single buffered']
    #allocation3 [shape = 's32[1]{0}', space=sflag, size = 0x4, scoped, tag = 'scoped memory for tpu_custom_call.1']
    #allocation4 [shape = 's32[1]{0}', space=sflag, size = 0x4, scoped, tag = 'scoped memory for tpu_custom_call.1']
    #allocation5 [shape = 'u8[65536]{0}', space=vmem, size = 0x10000, scoped, tag = 'input window, operand 1, single buffered']
    #allocation6 [shape = 's32[1]{0}', space=sflag, size = 0x4, scoped, tag = 'scoped memory for tpu_custom_call.1']
    #allocation7 [shape = 'u8[1024]{0}', space=vmem, size = 0x400, scoped, tag = 'input window, operand 2, single buffered']
    #allocation8 [shape = 'u8[4096]{0}', space=vmem, size = 0x1000, scoped, tag = 'output window, operand 0, single buffered']
    %8 = vsyncpa [#allocation3], 0
    %9 = vsyncpa [#allocation6], 0
    %10 = vsyncpa [#allocation4], 0
    // Predicated region
    $region2: #{tpu_custom_call.1} parent=1 // pred_check
      _
    $region3: #{tpu_custom_call.1} parent=1 // pred_check_branch
      %12 = sbr.rel (0) target = $region5
    $region4: #{tpu_custom_call.1} parent=1 // pred_region
      %14 = vsyncadd [#allocation3], 0
      %s16 = sshll.u32 %s0, 4
      %s17 = int_to_ptr.hbm [resolvable:$true] %s16
      %s18 = sshll.u32 [#allocation2], 4
      %s19 = int_to_ptr.vmem [resolvable:$true] %s18
      %21 = dma.hbm_to_vmem [thread:$0]  %s17, 128, %s19, [#allocation3]
    $region5: #{tpu_custom_call.1} parent=1 // pred_fallthru
      _
    // Predicated region
    $region6: #{tpu_custom_call.1} parent=1 // pred_check
      _
    $region7: #{tpu_custom_call.1} parent=1 // pred_check_branch
      %23 = sbr.rel (0) target = $region9
    $region8: #{tpu_custom_call.1} parent=1 // pred_region
      %25 = vsyncadd [#allocation6], 0
      %s26 = sshll.u32 %s1, 4
      %s27 = int_to_ptr.hbm [resolvable:$true] %s26
      %s28 = sshll.u32 [#allocation5], 4
      %s29 = int_to_ptr.vmem [resolvable:$true] %s28
      %34 = dma.hbm_to_vmem [thread:$0]  %s27, 2048, %s29, [#allocation6], 128, 128, 8
    $region9: #{tpu_custom_call.1} parent=1 // pred_fallthru
      _
    // Predicated region
    $region10: #{tpu_custom_call.1} parent=1 // pred_check
      _
    $region11: #{tpu_custom_call.1} parent=1 // pred_check_branch
      %36 = sbr.rel (0) target = $region13
    $region12: #{tpu_custom_call.1} parent=1 // pred_region
      %38 = vsyncadd [#allocation6], 0
      %s40 = sshll.u32 %s2, 4
      %s41 = int_to_ptr.hbm [resolvable:$true] %s40
      %s42 = sshll.u32 [#allocation7], 4
      %s43 = int_to_ptr.vmem [resolvable:$true] %s42
      %45 = dma.hbm_to_vmem [thread:$0]  %s41, 32, %s43, [#allocation6]
    $region13: #{tpu_custom_call.1} parent=1 // pred_fallthru
      _
    // Predicated region
    $region14: #{tpu_custom_call.1} parent=1 // pred_check
      _
    $region15: #{tpu_custom_call.1} parent=1 // pred_check_branch
      %47 = sbr.rel (0) target = $region17
    $region16: #{tpu_custom_call.1} parent=1 // pred_region
      %49 = dma.done [#allocation3], 128
    $region17: #{tpu_custom_call.1} parent=1 // pred_fallthru
      _
    // Predicated region
    $region18: #{tpu_custom_call.1} parent=1 // pred_check
      _
    $region19: #{tpu_custom_call.1} parent=1 // pred_check_branch
      %51 = sbr.rel (0) target = $region21
    $region20: #{tpu_custom_call.1} parent=1 // pred_region
      %53 = dma.done [#allocation6], 2048
    $region21: #{tpu_custom_call.1} parent=1 // pred_fallthru
      _
    // Predicated region
    $region22: #{tpu_custom_call.1} parent=1 // pred_check
      _
    $region23: #{tpu_custom_call.1} parent=1 // pred_check_branch
      %55 = sbr.rel (0) target = $region25
    $region24: #{tpu_custom_call.1} parent=1 // pred_region
      %57 = dma.done [#allocation6], 32
    $region25: #{tpu_custom_call.1} parent=1 // pred_fallthru
      _
    %v58 = vld [vmem:[#allocation2] sm:$0xff]
    %v59 = vpack.c.bf16 %v58, %v58
    %v60 = vld [vmem:[#allocation5] sm:$0xff]
    %v61 = vld [vmem:[#allocation5 + $0x8] sm:$0xff]
    %v62 = vld [vmem:[#allocation5 + $0x10] sm:$0xff]
    %v63 = vld [vmem:[#allocation5 + $0x18] sm:$0xff]
    %v64 = vld [vmem:[#allocation5 + $0x20] sm:$0xff]
    %v65 = vld [vmem:[#allocation5 + $0x28] sm:$0xff]
    %v66 = vld [vmem:[#allocation5 + $0x30] sm:$0xff]
    %v67 = vld [vmem:[#allocation5 + $0x38] sm:$0xff]
    %v68 = vld [vmem:[#allocation5 + $0x40] sm:$0xff]
    %v69 = vld [vmem:[#allocation5 + $0x48] sm:$0xff]
    %v70 = vld [vmem:[#allocation5 + $0x50] sm:$0xff]
    %v71 = vld [vmem:[#allocation5 + $0x58] sm:$0xff]
    %v72 = vld [vmem:[#allocation5 + $0x60] sm:$0xff]
    %v73 = vld [vmem:[#allocation5 + $0x68] sm:$0xff]
    %v74 = vld [vmem:[#allocation5 + $0x70] sm:$0xff]
    %v75 = vld [vmem:[#allocation5 + $0x78] sm:$0xff]
    %v76 = vld [vmem:[#allocation7] sm:$0x3]
    %v78 = vperm.slane %v76, 0
    %v79 = vperm.slane %v76, 1
    %v98 = vunpack.c.l.b16 %v60
    %v99 = vunpack.c.h.b16 %v60
    %v100 = vunpack.c.l.b16 %v61
    %v101 = vunpack.c.h.b16 %v61
    %v102 = vunpack.c.l.b16 %v62
    %v103 = vunpack.c.h.b16 %v62
    %v104 = vunpack.c.l.b16 %v63
    %v105 = vunpack.c.h.b16 %v63
    %v106 = vunpack.c.l.b16 %v64
    %v107 = vunpack.c.h.b16 %v64
    %v108 = vunpack.c.l.b16 %v65
    %v109 = vunpack.c.h.b16 %v65
    %v110 = vunpack.c.l.b16 %v66
    %v111 = vunpack.c.h.b16 %v66
    %v112 = vunpack.c.l.b16 %v67
    %v113 = vunpack.c.h.b16 %v67
    %v114 = vunpack.c.l.b16 %v68
    %v115 = vunpack.c.h.b16 %v68
    %v116 = vunpack.c.l.b16 %v69
    %v117 = vunpack.c.h.b16 %v69
    %v118 = vunpack.c.l.b16 %v70
    %v119 = vunpack.c.h.b16 %v70
    %v120 = vunpack.c.l.b16 %v71
    %v121 = vunpack.c.h.b16 %v71
    %v122 = vunpack.c.l.b16 %v72
    %v123 = vunpack.c.h.b16 %v72
    %v124 = vunpack.c.l.b16 %v73
    %v125 = vunpack.c.h.b16 %v73
    %v126 = vunpack.c.l.b16 %v74
    %v127 = vunpack.c.h.b16 %v74
    %v128 = vunpack.c.l.b16 %v75
    %v129 = vunpack.c.h.b16 %v75
    %v130 = vpack.c.b16 %v100, %v98
    %v131 = vpack.c.b16 %v101, %v99
    %v132 = vpack.c.b16 %v104, %v102
    %v133 = vpack.c.b16 %v105, %v103
    %v134 = vpack.c.b16 %v108, %v106
    %v135 = vpack.c.b16 %v109, %v107
    %v136 = vpack.c.b16 %v112, %v110
    %v137 = vpack.c.b16 %v113, %v111
    %v138 = vpack.c.b16 %v116, %v114
    %v139 = vpack.c.b16 %v117, %v115
    %v140 = vpack.c.b16 %v120, %v118
    %v141 = vpack.c.b16 %v121, %v119
    %v142 = vpack.c.b16 %v124, %v122
    %v143 = vpack.c.b16 %v125, %v123
    %v144 = vpack.c.b16 %v128, %v126
    %v145 = vpack.c.b16 %v129, %v127
    %162 = vmatpush.bf16.msra.mxu0 %v144
    %163 = vmatpush.bf16.msra.mxu0 %v142
    %164 = vmatpush.bf16.msra.mxu0 %v140
    %165 = vmatpush.bf16.msra.mxu0 %v138
    %166 = vmatpush.bf16.msra.mxu0 %v136
    %167 = vmatpush.bf16.msra.mxu0 %v134
    %168 = vmatpush.bf16.msra.mxu0 %v132
    %169 = vmatpush.bf16.msra.mxu0 %v130
    %170 = vmatmul.bf16.gmra.mxu0 %v59
    %v171 = vpop.f32.mrf.mxu0
    %v172 = vadd.f32 %v78, %v171
    %v173 = vpop.f32.mrf.mxu0
    %174 = vdwg.mxu0
    %175 = vmatpush.bf16.msra.mxu0 %v145
    %176 = vmatpush.bf16.msra.mxu0 %v143
    %177 = vmatpush.bf16.msra.mxu0 %v141
    %178 = vmatpush.bf16.msra.mxu0 %v139
    %179 = vmatpush.bf16.msra.mxu0 %v137
    %180 = vmatpush.bf16.msra.mxu0 %v135
    %181 = vmatpush.bf16.msra.mxu0 %v133
    %182 = vmatpush.bf16.msra.mxu0 %v131
    %183 = vmatmul.bf16.gmra.mxu0 %v59
    %v184 = vpop.f32.mrf.mxu0
    %v185 = vadd.f32 %v79, %v184
    %v186 = vpop.f32.mrf.mxu0
    %187 = vdwg.mxu0
    %v188 = vmax.f32 %v172, 0.0
    %v189 = vxor.u32 %v185, 2147483648
    %v190 = vmul.f32 %v189, 1.442695
    %v191 = vpow.pop %v190
    %v192 = vadd.f32 %v191, 1.0
    %v193 = vrcp.pop %v192
    %v194 = vmul.f32 %v192, %v193
    %v195 = vsub.f32 1.0, %v194
    %v196 = vmul.f32 %v193, %v195
    %v197 = vadd.f32 %v193, %v196
    %vm198 = vweird.f32 %v192
    %vm199 = vweird.f32 %v193
    %vm200 = vmor %vm198, %vm199
    %v201 = vsel %vm200, %v193, %v197
    %v202 = vand.u32 2147483647, %v192
    %vm203 = vcmp.eq.f32.partialorder %v202, 8.507059e+37
    %v204 = vand.u32 %v192, 2147483648
    %v205 = vor.u32 1.1754944e-38, %v204
    %v206 = vsel %vm203, %v205, %v201
    %v207 = vmul.f32 1.0, %v206
    %v208 = vsub.f32 %v188, %v58
    %v209 = vmul.f32 %v207, %v208
    %v210 = vadd.f32 %v58, %v209
    %211 = vst [vmem:[#allocation8] sm:$0xff] %v210
    // Predicated region
    $region26: #{tpu_custom_call.1} parent=1 // pred_check
      _
    $region27: #{tpu_custom_call.1} parent=1 // pred_check_branch
      %213 = sbr.rel (0) target = $region29
    $region28: #{tpu_custom_call.1} parent=1 // pred_region
      %215 = vsyncadd [#allocation4], 0
      %s217 = sshll.u32 [#allocation8], 4
      %s218 = int_to_ptr.vmem [resolvable:$true] %s217
      %s219 = sshll.u32 %s3, 4
      %s220 = int_to_ptr.hbm [resolvable:$true] %s219
      %222 = dma.vmem_to_hbm [thread:$0]  %s218, 128, %s220, [#allocation4]
    $region29: #{tpu_custom_call.1} parent=1 // pred_fallthru
      _
    // Predicated region
    $region30: #{tpu_custom_call.1} parent=1 // pred_check
      _
    $region31: #{tpu_custom_call.1} parent=1 // pred_check_branch
      %224 = sbr.rel (0) target = $region33
    $region32: #{tpu_custom_call.1} parent=1 // pred_region
      %226 = dma.done [#allocation4], 128
    $region33: #{tpu_custom_call.1} parent=1 // pred_fallthru
      _
    %227 = vsyncpa [#allocation3], 1
    %228 = vsyncpa [#allocation6], 1
    %229 = vsyncpa [#allocation4], 1

</llo_original>
